<compile_context>
chip_gen: v7x
topology: tpu7x:2x2x1
jax: 0.10.0
libtpu: 0.0.40
codegen_flags: <defaults>
</compile_context>

<pallas_src>
import functools

import jax
import jax.numpy as jnp
from jax.experimental import pallas as pl
from jax.experimental.pallas import tpu as pltpu


def _sigmoid(z):
    # 2-class softmax channel 1 == sigmoid(z1 - z0); tanh form runs on the EUP
    # (its own bundle slot) instead of a VPU divide chain.
    return 0.5 * jnp.tanh(0.5 * z) + 0.5


def _sum_all(a):
    # Full reduction kept 2-D throughout (lane reduce, then sublane reduce).
    return jnp.sum(jnp.sum(a, axis=-1, keepdims=True), axis=-2, keepdims=True)


def _vat_kernel(x_ref, noise_ref, w_ref, b_ref, mu_ref, sigma_ref,
                p0_ref, dzx_ref, pred1_ref, *, xi, eps, ip, batch, n_samples):
    """One (batch element, noise sample) step of the VAT-uncertainty forward.

    x_ref     : (Cin, R, 128)  VMEM  pixels for this batch element (resident)
    noise_ref : (Cin, R, 128)  VMEM  U(-0.5,0.5) draw for this (sample, batch)
    w_ref     : (2, Cin)       SMEM  1x1-conv weight (scalars)
    b_ref     : (2,)           SMEM  1x1-conv bias   (scalars)
    mu_ref, sigma_ref : (R,128) VMEM outputs, revisited across the sample axis
                        (double as the one-pass sum / sum-of-squares accums)
    p0_ref, dzx_ref, pred1_ref : (R,128) f32 VMEM scratch
    """
    si = pl.program_id(1)                 # sample index (inner, "arbitrary")
    cin = x_ref.shape[0]

    # ---- scalar weight prep (SMEM reads on the scalar path) -----------------
    # For a 2-class softmax only z1 - z0 matters, so the 1x1 conv collapses to
    #   dz(inp) = sum_c dw_c * inp[c] + db,   dw_c = W[1,c] - W[0,c].
    dwc = [w_ref[1, c] - w_ref[0, c] for c in range(cin)]
    db = b_ref[1] - b_ref[0]
    dw_sq = dwc[0] * dwc[0]
    for c in range(1, cin):
        dw_sq = dw_sq + dwc[c] * dwc[c]
    dw_nrm = jnp.sqrt(dw_sq)
    g_scale = xi / batch          # fold KL 'batchmean' 1/B and d(x+xi*d)/dd

    # ---- clean forward: once per batch element, cached in scratch -----------
    @pl.when(si == 0)
    def _():
        dz = x_ref[0].astype(jnp.float32) * dwc[0]
        for c in range(1, cin):
            dz = dz + x_ref[c].astype(jnp.float32) * dwc[c]
        dz = dz + db
        dzx_ref[...] = dz
        pred1_ref[...] = _sigmoid(dz)

    dz_x = dzx_ref[...]                   # (R, 128) clean logit difference
    pred1 = pred1_ref[...]                # clean class-1 probability

    # ---- raw noise d ~ U(-0.5,0.5): squared norm + weighted channel sum -----
    d0 = noise_ref[0].astype(jnp.float32)
    sq = d0 * d0
    dd = d0 * dwc[0]
    for c in range(1, cin):
        dc = noise_ref[c].astype(jnp.float32)
        sq = sq + dc * dc
        dd = dd + dc * dwc[c]
    nrm = jnp.sqrt(_sum_all(sq))          # (1,1) per-(sample,batch) L2 norm
    ddot_d = dd * (1.0 / (nrm + 1e-8))    # weighted channel-sum of normalized d

    # ---- power iteration(s) --------------------------------------------------
    # After a gradient step d factorizes as d[c,p] = gdir[p] * dw_c, so only a
    # single (R,128) plane is carried and sum_c dw_c * d[c] == dw_sq * gdir.
    for _ in range(ip):
        dz_p = dz_x + xi * ddot_d
        g = (_sigmoid(dz_p) - pred1) * g_scale            # xi/B * dKL/dlogit1
        g_nrm = jnp.sqrt(_sum_all(g * g))                 # (1,1)
        ddot_d = g * (dw_sq / (g_nrm * dw_nrm + 1e-8))    # dw_sq * l2-norm dir

    # ---- perturbed prediction with r_adv = eps * d (class-1 probability) ----
    p1 = _sigmoid(dz_x + eps * ddot_d)                    # (R, 128)

    # ---- one-pass mean / std (np.std ddof=0), shifted about sample 0 --------
    @pl.when(si == 0)
    def _():
        p0_ref[...] = p1
        mu_ref[...] = jnp.zeros_like(mu_ref)        # s1 = sum_i (p_i - p_0)
        sigma_ref[...] = jnp.zeros_like(sigma_ref)  # s2 = sum_i (p_i - p_0)^2

    @pl.when(si > 0)
    def _():
        d = p1 - p0_ref[...]
        mu_ref[...] = mu_ref[...] + d
        sigma_ref[...] = sigma_ref[...] + d * d

    @pl.when(si == n_samples - 1)
    def _():
        inv_n = 1.0 / n_samples
        s1 = mu_ref[...] * inv_n
        s2 = sigma_ref[...] * inv_n
        var = jnp.maximum(s2 - s1 * s1, 0.0)
        mu_ref[...] = p0_ref[...] + s1
        sigma_ref[...] = jnp.sqrt(var)


def vat_uncertainty(x_nchw, weight, bias, noise, *, xi=10.0, eps=1.0, ip=1):
    """x_nchw: (B, Cin, H, W); weight: (2, Cin) 1x1 conv; bias: (2,);
    noise: (n, B, Cin, H, W) uniform(-0.5, 0.5), any float dtype (bf16 ok).
    Returns (mu, sigma), each (B, H, W) — mean / std over the n perturbed
    class-1 probability maps."""
    B, Cin, H, W = x_nchw.shape
    n = noise.shape[0]
    assert weight.shape[0] == 2, "kernel specialized to the 2-class head"
    P = H * W
    assert P % 128 == 0, "H*W must be a multiple of 128 (lane-dense layout)"
    R = P // 128

    # Pure reshapes, no dtype casts: pixels land on a dense (R, 128) layout;
    # all upcasts happen per-tile inside the kernel.
    x = x_nchw.reshape(B, Cin, R, 128)
    d0 = noise.reshape(n, B, Cin, R, 128)
    w = weight.astype(jnp.float32)        # (2, Cin) -> SMEM scalars
    b = bias.astype(jnp.float32)          # (2,)     -> SMEM scalars

    kernel = functools.partial(_vat_kernel, xi=float(xi), eps=float(eps),
                               ip=int(ip), batch=float(B), n_samples=int(n))

    mu, sigma = pl.pallas_call(
        kernel,
        out_shape=(jax.ShapeDtypeStruct((B, R, 128), jnp.float32),
                   jax.ShapeDtypeStruct((B, R, 128), jnp.float32)),
        grid_spec=pltpu.PrefetchScalarGridSpec(
            num_scalar_prefetch=0,
            grid=(B, n),                                  # (batch, sample)
            in_specs=[
                # x: same block across the sample axis -> stays VMEM-resident
                pl.BlockSpec((None, Cin, R, 128), lambda bi, si: (bi, 0, 0, 0)),
                # noise: a new (sample, batch) block each step -> pipelined DMA
                pl.BlockSpec((None, None, Cin, R, 128),
                             lambda bi, si: (si, bi, 0, 0, 0)),
                pl.BlockSpec(memory_space=pltpu.MemorySpace.SMEM),   # weight
                pl.BlockSpec(memory_space=pltpu.MemorySpace.SMEM),   # bias
            ],
            out_specs=(
                # revisited across the sample axis -> accumulator pattern
                pl.BlockSpec((None, R, 128), lambda bi, si: (bi, 0, 0)),
                pl.BlockSpec((None, R, 128), lambda bi, si: (bi, 0, 0)),
            ),
            scratch_shapes=[
                pltpu.VMEM((R, 128), jnp.float32),   # p0 (first sample plane)
                pltpu.VMEM((R, 128), jnp.float32),   # cached clean logit diff
                pltpu.VMEM((R, 128), jnp.float32),   # cached clean class-1 prob
            ]),
        compiler_params=pltpu.CompilerParams(
            dimension_semantics=("parallel", "arbitrary")),
    )(x, d0, w, b)

    return mu.reshape(B, H, W), sigma.reshape(B, H, W)


# ----------------------- pure-JAX reference (NCHW) ---------------------------
def _reference(x_nchw, weight, bias, noise, xi, eps, ip):
    B = x_nchw.shape[0]

    def model(inp):
        return (jnp.einsum('bchw,oc->bohw', inp, weight)
                + bias[None, :, None, None])

    def l2n(d):
        norm = jnp.sqrt(jnp.sum(d * d, axis=(1, 2, 3), keepdims=True))
        return d / (norm + 1e-8)

    pred = jax.nn.softmax(model(x_nchw), axis=1)
    preds = []
    for k in range(noise.shape[0]):
        d = l2n(noise[k])
        for _ in range(ip):
            def kl(dd):
                logp_hat = jax.nn.log_softmax(model(x_nchw + xi * dd), axis=1)
                return jnp.sum(pred * (jnp.log(pred) - logp_hat)) / B
            d = l2n(jax.grad(kl)(d))
        ph = jax.nn.softmax(model(x_nchw + eps * d), axis=1)
        preds.append(ph[:, 1, :, :])
    stack = jnp.stack(preds, axis=1)
    return stack.mean(axis=1), stack.std(axis=1)


if __name__ == "__main__":
    B, Cin, H, W = 2, 4, 16, 16
    Cout = 2              # class-1 channel is extracted -> exactly 2 classes
    N_VAT = 5             # self.n
    XI, EPS, IP = 10.0, 1.0, 1

    key = jax.random.PRNGKey(0)
    kx, kw, kb, kn = jax.random.split(key, 4)

    x = jax.random.normal(kx, (B, Cin, H, W), dtype=jnp.float32)

    # deterministic 1x1-conv params (PyTorch-style uniform(-1/sqrt(fan_in), .))
    bound = 1.0 / jnp.sqrt(jnp.float32(Cin))
    weight = jax.random.uniform(kw, (Cout, Cin), jnp.float32, -bound, bound)
    bias = jax.random.uniform(kb, (Cout,), jnp.float32, -bound, bound)

    # The n noise draws (torch.rand(x.shape) - 0.5).  Shipped as bf16: halves
    # the dominant HBM stream; the kernel upcasts per-tile in VMEM.
    noise = (jax.random.uniform(kn, (N_VAT, B, Cin, H, W), jnp.float32)
             - 0.5).astype(jnp.bfloat16)

    mu, sigma = vat_uncertainty(x, weight, bias, noise, xi=XI, eps=EPS, ip=IP)
    mu, sigma = jax.block_until_ready((mu, sigma))

    mu_ref, sigma_ref = _reference(x, weight, bias,
                                   noise.astype(jnp.float32), XI, EPS, IP)
    assert mu.shape == (B, H, W) and sigma.shape == (B, H, W)
    assert jnp.max(jnp.abs(mu - mu_ref)) < 1e-4, "mu mismatch"
    assert jnp.max(jnp.abs(sigma - sigma_ref)) < 1e-4, "sigma mismatch"

    print("KERNEL_OK")
</pallas_src>

<mosaic_0001>
module attributes {stable_mosaic.version = 11 : i64} {
  func.func @_vat_kernel(%arg0: i32, %arg1: i32, %arg2: memref<1x4x2x128xf32, #tpu.memory_space<vmem>>, %arg3: memref<1x1x4x2x128xbf16, #tpu.memory_space<vmem>>, %arg4: memref<2x4xf32, #tpu.memory_space<smem>>, %arg5: memref<2xf32, #tpu.memory_space<smem>>, %arg6: memref<1x2x128xf32, #tpu.memory_space<vmem>>, %arg7: memref<1x2x128xf32, #tpu.memory_space<vmem>>, %arg8: memref<2x128xf32, #tpu.memory_space<vmem>>, %arg9: memref<2x128xf32, #tpu.memory_space<vmem>>, %arg10: memref<2x128xf32, #tpu.memory_space<vmem>>) attributes {dimension_semantics = [#tpu.dimension_semantics<parallel>, #tpu.dimension_semantics<arbitrary>], iteration_bounds = array<i64: 2, 5>, scalar_prefetch = 0 : i64, scratch_operands = 3 : i64, tpu.core_type = #tpu.core_type<tc>, window_params = [{transform_indices = @transform_0, window_bounds = array<i64: 1, 4, 2, 128>}, {transform_indices = @transform_1, window_bounds = array<i64: 1, 1, 4, 2, 128>}, {transform_indices = @transform_2, window_bounds = array<i64: 2, 4>}, {transform_indices = @transform_3, window_bounds = array<i64: 2>}, {transform_indices = @transform_4, window_bounds = array<i64: 1, 2, 128>}, {transform_indices = @transform_5, window_bounds = array<i64: 1, 2, 128>}]} {
    %c1 = arith.constant 1 : index
    %c0 = arith.constant 0 : index
    %0 = memref.load %arg4[%c1, %c0] : memref<2x4xf32, #tpu.memory_space<smem>>
    %c0_0 = arith.constant 0 : index
    %c0_1 = arith.constant 0 : index
    %1 = memref.load %arg4[%c0_0, %c0_1] : memref<2x4xf32, #tpu.memory_space<smem>>
    %2 = arith.subf %0, %1 : f32
    %c1_2 = arith.constant 1 : index
    %c1_3 = arith.constant 1 : index
    %3 = memref.load %arg4[%c1_2, %c1_3] : memref<2x4xf32, #tpu.memory_space<smem>>
    %c0_4 = arith.constant 0 : index
    %c1_5 = arith.constant 1 : index
    %4 = memref.load %arg4[%c0_4, %c1_5] : memref<2x4xf32, #tpu.memory_space<smem>>
    %5 = arith.subf %3, %4 : f32
    %c1_6 = arith.constant 1 : index
    %c2 = arith.constant 2 : index
    %6 = memref.load %arg4[%c1_6, %c2] : memref<2x4xf32, #tpu.memory_space<smem>>
    %c0_7 = arith.constant 0 : index
    %c2_8 = arith.constant 2 : index
    %7 = memref.load %arg4[%c0_7, %c2_8] : memref<2x4xf32, #tpu.memory_space<smem>>
    %8 = arith.subf %6, %7 : f32
    %c1_9 = arith.constant 1 : index
    %c3 = arith.constant 3 : index
    %9 = memref.load %arg4[%c1_9, %c3] : memref<2x4xf32, #tpu.memory_space<smem>>
    %c0_10 = arith.constant 0 : index
    %c3_11 = arith.constant 3 : index
    %10 = memref.load %arg4[%c0_10, %c3_11] : memref<2x4xf32, #tpu.memory_space<smem>>
    %11 = arith.subf %9, %10 : f32
    %c1_12 = arith.constant 1 : index
    %12 = memref.load %arg5[%c1_12] : memref<2xf32, #tpu.memory_space<smem>>
    %c0_13 = arith.constant 0 : index
    %13 = memref.load %arg5[%c0_13] : memref<2xf32, #tpu.memory_space<smem>>
    %14 = arith.subf %12, %13 : f32
    %15 = arith.mulf %2, %2 : f32
    %16 = arith.mulf %5, %5 : f32
    %17 = arith.addf %15, %16 : f32
    %18 = arith.mulf %8, %8 : f32
    %19 = arith.addf %17, %18 : f32
    %20 = arith.mulf %11, %11 : f32
    %21 = arith.addf %19, %20 : f32
    %22 = math.sqrt %21 : f32
    %c0_i32 = arith.constant 0 : i32
    %23 = arith.cmpi eq, %arg1, %c0_i32 : i32
    %24 = arith.extui %23 : i1 to i32
    %c0_i32_14 = arith.constant 0 : i32
    %25 = arith.cmpi ne, %24, %c0_i32_14 : i32
    scf.if %25 {
      %c0_59 = arith.constant 0 : index
      %c0_60 = arith.constant 0 : index
      %c0_61 = arith.constant 0 : index
      %c0_62 = arith.constant 0 : index
      %115 = vector.load %arg2[%c0_59, %c0_60, %c0_61, %c0_62] : memref<1x4x2x128xf32, #tpu.memory_space<vmem>>, vector<1x1x2x128xf32>
      %116 = vector.shape_cast %115 : vector<1x1x2x128xf32> to vector<2x128xf32>
      %117 = vector.broadcast %2 : f32 to vector<2x128xf32>
      %118 = arith.mulf %116, %117 : vector<2x128xf32>
      %c0_63 = arith.constant 0 : index
      %c1_64 = arith.constant 1 : index
      %c0_65 = arith.constant 0 : index
      %c0_66 = arith.constant 0 : index
      %119 = vector.load %arg2[%c0_63, %c1_64, %c0_65, %c0_66] : memref<1x4x2x128xf32, #tpu.memory_space<vmem>>, vector<1x1x2x128xf32>
      %120 = vector.shape_cast %119 : vector<1x1x2x128xf32> to vector<2x128xf32>
      %121 = vector.broadcast %5 : f32 to vector<2x128xf32>
      %122 = arith.mulf %120, %121 : vector<2x128xf32>
      %123 = arith.addf %118, %122 : vector<2x128xf32>
      %c0_67 = arith.constant 0 : index
      %c2_68 = arith.constant 2 : index
      %c0_69 = arith.constant 0 : index
      %c0_70 = arith.constant 0 : index
      %124 = vector.load %arg2[%c0_67, %c2_68, %c0_69, %c0_70] : memref<1x4x2x128xf32, #tpu.memory_space<vmem>>, vector<1x1x2x128xf32>
      %125 = vector.shape_cast %124 : vector<1x1x2x128xf32> to vector<2x128xf32>
      %126 = vector.broadcast %8 : f32 to vector<2x128xf32>
      %127 = arith.mulf %125, %126 : vector<2x128xf32>
      %128 = arith.addf %123, %127 : vector<2x128xf32>
      %c0_71 = arith.constant 0 : index
      %c3_72 = arith.constant 3 : index
      %c0_73 = arith.constant 0 : index
      %c0_74 = arith.constant 0 : index
      %129 = vector.load %arg2[%c0_71, %c3_72, %c0_73, %c0_74] : memref<1x4x2x128xf32, #tpu.memory_space<vmem>>, vector<1x1x2x128xf32>
      %130 = vector.shape_cast %129 : vector<1x1x2x128xf32> to vector<2x128xf32>
      %131 = vector.broadcast %11 : f32 to vector<2x128xf32>
      %132 = arith.mulf %130, %131 : vector<2x128xf32>
      %133 = arith.addf %128, %132 : vector<2x128xf32>
      %134 = vector.broadcast %14 : f32 to vector<2x128xf32>
      %135 = arith.addf %133, %134 : vector<2x128xf32>
      %c0_75 = arith.constant 0 : index
      %c0_76 = arith.constant 0 : index
      %136 = vector.load %arg9[%c0_75, %c0_76] : memref<2x128xf32, #tpu.memory_space<vmem>>, vector<2x128xf32>
      tpu.vector_store %arg9[%c0_75, %c0_76], %135 {strides = array<i32>} : memref<2x128xf32, #tpu.memory_space<vmem>>, vector<2x128xf32>,
      %cst_77 = arith.constant 5.000000e-01 : f32
      %137 = vector.broadcast %cst_77 : f32 to vector<2x128xf32>
      %138 = arith.mulf %137, %135 : vector<2x128xf32>
      %139 = math.tanh %138 : vector<2x128xf32>
      %cst_78 = arith.constant 5.000000e-01 : f32
      %140 = vector.broadcast %cst_78 : f32 to vector<2x128xf32>
      %141 = arith.mulf %140, %139 : vector<2x128xf32>
      %cst_79 = arith.constant 5.000000e-01 : f32
      %142 = vector.broadcast %cst_79 : f32 to vector<2x128xf32>
      %143 = arith.addf %141, %142 : vector<2x128xf32>
      %c0_80 = arith.constant 0 : index
      %c0_81 = arith.constant 0 : index
      %144 = vector.load %arg10[%c0_80, %c0_81] : memref<2x128xf32, #tpu.memory_space<vmem>>, vector<2x128xf32>
      tpu.vector_store %arg10[%c0_80, %c0_81], %143 {strides = array<i32>} : memref<2x128xf32, #tpu.memory_space<vmem>>, vector<2x128xf32>,
    } else {
    }
    %c0_15 = arith.constant 0 : index
    %c0_16 = arith.constant 0 : index
    %26 = vector.load %arg9[%c0_15, %c0_16] : memref<2x128xf32, #tpu.memory_space<vmem>>, vector<2x128xf32>
    %c0_17 = arith.constant 0 : index
    %c0_18 = arith.constant 0 : index
    %27 = vector.load %arg10[%c0_17, %c0_18] : memref<2x128xf32, #tpu.memory_space<vmem>>, vector<2x128xf32>
    %c0_19 = arith.constant 0 : index
    %c0_20 = arith.constant 0 : index
    %c0_21 = arith.constant 0 : index
    %c0_22 = arith.constant 0 : index
    %c0_23 = arith.constant 0 : index
    %28 = vector.load %arg3[%c0_19, %c0_20, %c0_21, %c0_22, %c0_23] : memref<1x1x4x2x128xbf16, #tpu.memory_space<vmem>>, vector<1x1x1x2x128xbf16>
    %29 = vector.shape_cast %28 : vector<1x1x1x2x128xbf16> to vector<2x128xbf16>
    %30 = arith.extf %29 : vector<2x128xbf16> to vector<2x128xf32>
    %31 = arith.mulf %30, %30 : vector<2x128xf32>
    %32 = vector.broadcast %2 : f32 to vector<2x128xf32>
    %33 = arith.mulf %30, %32 : vector<2x128xf32>
    %c0_24 = arith.constant 0 : index
    %c0_25 = arith.constant 0 : index
    %c1_26 = arith.constant 1 : index
    %c0_27 = arith.constant 0 : index
    %c0_28 = arith.constant 0 : index
    %34 = vector.load %arg3[%c0_24, %c0_25, %c1_26, %c0_27, %c0_28] : memref<1x1x4x2x128xbf16, #tpu.memory_space<vmem>>, vector<1x1x1x2x128xbf16>
    %35 = vector.shape_cast %34 : vector<1x1x1x2x128xbf16> to vector<2x128xbf16>
    %36 = arith.extf %35 : vector<2x128xbf16> to vector<2x128xf32>
    %37 = arith.mulf %36, %36 : vector<2x128xf32>
    %38 = arith.addf %31, %37 : vector<2x128xf32>
    %39 = vector.broadcast %5 : f32 to vector<2x128xf32>
    %40 = arith.mulf %36, %39 : vector<2x128xf32>
    %41 = arith.addf %33, %40 : vector<2x128xf32>
    %c0_29 = arith.constant 0 : index
    %c0_30 = arith.constant 0 : index
    %c2_31 = arith.constant 2 : index
    %c0_32 = arith.constant 0 : index
    %c0_33 = arith.constant 0 : index
    %42 = vector.load %arg3[%c0_29, %c0_30, %c2_31, %c0_32, %c0_33] : memref<1x1x4x2x128xbf16, #tpu.memory_space<vmem>>, vector<1x1x1x2x128xbf16>
    %43 = vector.shape_cast %42 : vector<1x1x1x2x128xbf16> to vector<2x128xbf16>
    %44 = arith.extf %43 : vector<2x128xbf16> to vector<2x128xf32>
    %45 = arith.mulf %44, %44 : vector<2x128xf32>
    %46 = arith.addf %38, %45 : vector<2x128xf32>
    %47 = vector.broadcast %8 : f32 to vector<2x128xf32>
    %48 = arith.mulf %44, %47 : vector<2x128xf32>
    %49 = arith.addf %41, %48 : vector<2x128xf32>
    %c0_34 = arith.constant 0 : index
    %c0_35 = arith.constant 0 : index
    %c3_36 = arith.constant 3 : index
    %c0_37 = arith.constant 0 : index
    %c0_38 = arith.constant 0 : index
    %50 = vector.load %arg3[%c0_34, %c0_35, %c3_36, %c0_37, %c0_38] : memref<1x1x4x2x128xbf16, #tpu.memory_space<vmem>>, vector<1x1x1x2x128xbf16>
    %51 = vector.shape_cast %50 : vector<1x1x1x2x128xbf16> to vector<2x128xbf16>
    %52 = arith.extf %51 : vector<2x128xbf16> to vector<2x128xf32>
    %53 = arith.mulf %52, %52 : vector<2x128xf32>
    %54 = arith.addf %46, %53 : vector<2x128xf32>
    %55 = vector.broadcast %11 : f32 to vector<2x128xf32>
    %56 = arith.mulf %52, %55 : vector<2x128xf32>
    %57 = arith.addf %49, %56 : vector<2x128xf32>
    %cst = arith.constant dense<0.000000e+00> : vector<2xf32>
    %58 = vector.multi_reduction <add>, %54, %cst [1] : vector<2x128xf32> to vector<2xf32>
    %59 = vector.shape_cast %58 : vector<2xf32> to vector<2x1xf32>
    %cst_39 = arith.constant dense<0.000000e+00> : vector<1xf32>
    %60 = vector.multi_reduction <add>, %59, %cst_39 [0] : vector<2x1xf32> to vector<1xf32>
    %61 = vector.shape_cast %60 : vector<1xf32> to vector<1x1xf32>
    %62 = math.sqrt %61 : vector<1x1xf32>
    %cst_40 = arith.constant 9.99999993E-9 : f32
    %63 = vector.broadcast %cst_40 : f32 to vector<1x1xf32>
    %64 = arith.addf %62, %63 : vector<1x1xf32>
    %cst_41 = arith.constant 1.000000e+00 : f32
    %65 = vector.broadcast %cst_41 : f32 to vector<1x1xf32>
    %66 = arith.divf %65, %64 : vector<1x1xf32>
    %67 = vector.broadcast %66 : vector<1x1xf32> to vector<2x128xf32>
    %68 = arith.mulf %57, %67 : vector<2x128xf32>
    %cst_42 = arith.constant 1.000000e+01 : f32
    %69 = vector.broadcast %cst_42 : f32 to vector<2x128xf32>
    %70 = arith.mulf %69, %68 : vector<2x128xf32>
    %71 = arith.addf %26, %70 : vector<2x128xf32>
    %cst_43 = arith.constant 5.000000e-01 : f32
    %72 = vector.broadcast %cst_43 : f32 to vector<2x128xf32>
    %73 = arith.mulf %72, %71 : vector<2x128xf32>
    %74 = math.tanh %73 : vector<2x128xf32>
    %cst_44 = arith.constant 5.000000e-01 : f32
    %75 = vector.broadcast %cst_44 : f32 to vector<2x128xf32>
    %76 = arith.mulf %75, %74 : vector<2x128xf32>
    %cst_45 = arith.constant 5.000000e-01 : f32
    %77 = vector.broadcast %cst_45 : f32 to vector<2x128xf32>
    %78 = arith.addf %76, %77 : vector<2x128xf32>
    %79 = arith.subf %78, %27 : vector<2x128xf32>
    %cst_46 = arith.constant 5.000000e+00 : f32
    %80 = vector.broadcast %cst_46 : f32 to vector<2x128xf32>
    %81 = arith.mulf %79, %80 : vector<2x128xf32>
    %82 = arith.mulf %81, %81 : vector<2x128xf32>
    %cst_47 = arith.constant dense<0.000000e+00> : vector<2xf32>
    %83 = vector.multi_reduction <add>, %82, %cst_47 [1] : vector<2x128xf32> to vector<2xf32>
    %84 = vector.shape_cast %83 : vector<2xf32> to vector<2x1xf32>
    %cst_48 = arith.constant dense<0.000000e+00> : vector<1xf32>
    %85 = vector.multi_reduction <add>, %84, %cst_48 [0] : vector<2x1xf32> to vector<1xf32>
    %86 = vector.shape_cast %85 : vector<1xf32> to vector<1x1xf32>
    %87 = math.sqrt %86 : vector<1x1xf32>
    %88 = vector.broadcast %22 : f32 to vector<1x1xf32>
    %89 = arith.mulf %87, %88 : vector<1x1xf32>
    %cst_49 = arith.constant 9.99999993E-9 : f32
    %90 = vector.broadcast %cst_49 : f32 to vector<1x1xf32>
    %91 = arith.addf %89, %90 : vector<1x1xf32>
    %92 = vector.broadcast %21 : f32 to vector<1x1xf32>
    %93 = arith.divf %92, %91 : vector<1x1xf32>
    %94 = vector.broadcast %93 : vector<1x1xf32> to vector<2x128xf32>
    %95 = arith.mulf %81, %94 : vector<2x128xf32>
    %cst_50 = arith.constant 1.000000e+00 : f32
    %96 = vector.broadcast %cst_50 : f32 to vector<2x128xf32>
    %97 = arith.mulf %96, %95 : vector<2x128xf32>
    %98 = arith.addf %26, %97 : vector<2x128xf32>
    %cst_51 = arith.constant 5.000000e-01 : f32
    %99 = vector.broadcast %cst_51 : f32 to vector<2x128xf32>
    %100 = arith.mulf %99, %98 : vector<2x128xf32>
    %101 = math.tanh %100 : vector<2x128xf32>
    %cst_52 = arith.constant 5.000000e-01 : f32
    %102 = vector.broadcast %cst_52 : f32 to vector<2x128xf32>
    %103 = arith.mulf %102, %101 : vector<2x128xf32>
    %cst_53 = arith.constant 5.000000e-01 : f32
    %104 = vector.broadcast %cst_53 : f32 to vector<2x128xf32>
    %105 = arith.addf %103, %104 : vector<2x128xf32>
    %c0_i32_54 = arith.constant 0 : i32
    %106 = arith.cmpi eq, %arg1, %c0_i32_54 : i32
    %107 = arith.extui %106 : i1 to i32
    %c0_i32_55 = arith.constant 0 : i32
    %108 = arith.cmpi ne, %107, %c0_i32_55 : i32
    scf.if %108 {
      %c0_59 = arith.constant 0 : index
      %c0_60 = arith.constant 0 : index
      %115 = vector.load %arg8[%c0_59, %c0_60] : memref<2x128xf32, #tpu.memory_space<vmem>>, vector<2x128xf32>
      tpu.vector_store %arg8[%c0_59, %c0_60], %105 {strides = array<i32>} : memref<2x128xf32, #tpu.memory_space<vmem>>, vector<2x128xf32>,
      %cst_61 = arith.constant 0.000000e+00 : f32
      %116 = vector.broadcast %cst_61 : f32 to vector<2x128xf32>
      %c0_62 = arith.constant 0 : index
      %c0_63 = arith.constant 0 : index
      %c0_64 = arith.constant 0 : index
      %117 = vector.load %arg6[%c0_62, %c0_63, %c0_64] : memref<1x2x128xf32, #tpu.memory_space<vmem>>, vector<1x2x128xf32>
      %118 = vector.shape_cast %117 : vector<1x2x128xf32> to vector<2x128xf32>
      %119 = vector.shape_cast %116 : vector<2x128xf32> to vector<1x2x128xf32>
      tpu.vector_store %arg6[%c0_62, %c0_63, %c0_64], %119 {strides = array<i32>} : memref<1x2x128xf32, #tpu.memory_space<vmem>>, vector<1x2x128xf32>,
      %cst_65 = arith.constant 0.000000e+00 : f32
      %120 = vector.broadcast %cst_65 : f32 to vector<2x128xf32>
      %c0_66 = arith.constant 0 : index
      %c0_67 = arith.constant 0 : index
      %c0_68 = arith.constant 0 : index
      %121 = vector.load %arg7[%c0_66, %c0_67, %c0_68] : memref<1x2x128xf32, #tpu.memory_space<vmem>>, vector<1x2x128xf32>
      %122 = vector.shape_cast %121 : vector<1x2x128xf32> to vector<2x128xf32>
      %123 = vector.shape_cast %120 : vector<2x128xf32> to vector<1x2x128xf32>
      tpu.vector_store %arg7[%c0_66, %c0_67, %c0_68], %123 {strides = array<i32>} : memref<1x2x128xf32, #tpu.memory_space<vmem>>, vector<1x2x128xf32>,
    } else {
    }
    %c0_i32_56 = arith.constant 0 : i32
    %109 = arith.cmpi sgt, %arg1, %c0_i32_56 : i32
    %110 = arith.extui %109 : i1 to i32
    %c0_i32_57 = arith.constant 0 : i32
    %111 = arith.cmpi ne, %110, %c0_i32_57 : i32
    scf.if %111 {
      %c0_59 = arith.constant 0 : index
      %c0_60 = arith.constant 0 : index
      %115 = vector.load %arg8[%c0_59, %c0_60] : memref<2x128xf32, #tpu.memory_space<vmem>>, vector<2x128xf32>
      %116 = arith.subf %105, %115 : vector<2x128xf32>
      %c0_61 = arith.constant 0 : index
      %c0_62 = arith.constant 0 : index
      %c0_63 = arith.constant 0 : index
      %117 = vector.load %arg6[%c0_61, %c0_62, %c0_63] : memref<1x2x128xf32, #tpu.memory_space<vmem>>, vector<1x2x128xf32>
      %118 = vector.shape_cast %117 : vector<1x2x128xf32> to vector<2x128xf32>
      %119 = arith.addf %118, %116 : vector<2x128xf32>
      %c0_64 = arith.constant 0 : index
      %c0_65 = arith.constant 0 : index
      %c0_66 = arith.constant 0 : index
      %120 = vector.load %arg6[%c0_64, %c0_65, %c0_66] : memref<1x2x128xf32, #tpu.memory_space<vmem>>, vector<1x2x128xf32>
      %121 = vector.shape_cast %120 : vector<1x2x128xf32> to vector<2x128xf32>
      %122 = vector.shape_cast %119 : vector<2x128xf32> to vector<1x2x128xf32>
      tpu.vector_store %arg6[%c0_64, %c0_65, %c0_66], %122 {strides = array<i32>} : memref<1x2x128xf32, #tpu.memory_space<vmem>>, vector<1x2x128xf32>,
      %c0_67 = arith.constant 0 : index
      %c0_68 = arith.constant 0 : index
      %c0_69 = arith.constant 0 : index
      %123 = vector.load %arg7[%c0_67, %c0_68, %c0_69] : memref<1x2x128xf32, #tpu.memory_space<vmem>>, vector<1x2x128xf32>
      %124 = vector.shape_cast %123 : vector<1x2x128xf32> to vector<2x128xf32>
      %125 = arith.mulf %116, %116 : vector<2x128xf32>
      %126 = arith.addf %124, %125 : vector<2x128xf32>
      %c0_70 = arith.constant 0 : index
      %c0_71 = arith.constant 0 : index
      %c0_72 = arith.constant 0 : index
      %127 = vector.load %arg7[%c0_70, %c0_71, %c0_72] : memref<1x2x128xf32, #tpu.memory_space<vmem>>, vector<1x2x128xf32>
      %128 = vector.shape_cast %127 : vector<1x2x128xf32> to vector<2x128xf32>
      %129 = vector.shape_cast %126 : vector<2x128xf32> to vector<1x2x128xf32>
      tpu.vector_store %arg7[%c0_70, %c0_71, %c0_72], %129 {strides = array<i32>} : memref<1x2x128xf32, #tpu.memory_space<vmem>>, vector<1x2x128xf32>,
    } else {
    }
    %c4_i32 = arith.constant 4 : i32
    %112 = arith.cmpi eq, %arg1, %c4_i32 : i32
    %113 = arith.extui %112 : i1 to i32
    %c0_i32_58 = arith.constant 0 : i32
    %114 = arith.cmpi ne, %113, %c0_i32_58 : i32
    scf.if %114 {
      %c0_59 = arith.constant 0 : index
      %c0_60 = arith.constant 0 : index
      %c0_61 = arith.constant 0 : index
      %115 = vector.load %arg6[%c0_59, %c0_60, %c0_61] : memref<1x2x128xf32, #tpu.memory_space<vmem>>, vector<1x2x128xf32>
      %116 = vector.shape_cast %115 : vector<1x2x128xf32> to vector<2x128xf32>
      %cst_62 = arith.constant 2.000000e-01 : f32
      %117 = vector.broadcast %cst_62 : f32 to vector<2x128xf32>
      %118 = arith.mulf %116, %117 : vector<2x128xf32>
      %c0_63 = arith.constant 0 : index
      %c0_64 = arith.constant 0 : index
      %c0_65 = arith.constant 0 : index
      %119 = vector.load %arg7[%c0_63, %c0_64, %c0_65] : memref<1x2x128xf32, #tpu.memory_space<vmem>>, vector<1x2x128xf32>
      %120 = vector.shape_cast %119 : vector<1x2x128xf32> to vector<2x128xf32>
      %cst_66 = arith.constant 2.000000e-01 : f32
      %121 = vector.broadcast %cst_66 : f32 to vector<2x128xf32>
      %122 = arith.mulf %120, %121 : vector<2x128xf32>
      %123 = arith.mulf %118, %118 : vector<2x128xf32>
      %124 = arith.subf %122, %123 : vector<2x128xf32>
      %cst_67 = arith.constant 0.000000e+00 : f32
      %125 = vector.broadcast %cst_67 : f32 to vector<2x128xf32>
      %126 = arith.maximumf %124, %125 : vector<2x128xf32>
      %c0_68 = arith.constant 0 : index
      %c0_69 = arith.constant 0 : index
      %127 = vector.load %arg8[%c0_68, %c0_69] : memref<2x128xf32, #tpu.memory_space<vmem>>, vector<2x128xf32>
      %128 = arith.addf %127, %118 : vector<2x128xf32>
      %c0_70 = arith.constant 0 : index
      %c0_71 = arith.constant 0 : index
      %c0_72 = arith.constant 0 : index
      %129 = vector.load %arg6[%c0_70, %c0_71, %c0_72] : memref<1x2x128xf32, #tpu.memory_space<vmem>>, vector<1x2x128xf32>
      %130 = vector.shape_cast %129 : vector<1x2x128xf32> to vector<2x128xf32>
      %131 = vector.shape_cast %128 : vector<2x128xf32> to vector<1x2x128xf32>
      tpu.vector_store %arg6[%c0_70, %c0_71, %c0_72], %131 {strides = array<i32>} : memref<1x2x128xf32, #tpu.memory_space<vmem>>, vector<1x2x128xf32>,
      %132 = math.sqrt %126 : vector<2x128xf32>
      %c0_73 = arith.constant 0 : index
      %c0_74 = arith.constant 0 : index
      %c0_75 = arith.constant 0 : index
      %133 = vector.load %arg7[%c0_73, %c0_74, %c0_75] : memref<1x2x128xf32, #tpu.memory_space<vmem>>, vector<1x2x128xf32>
      %134 = vector.shape_cast %133 : vector<1x2x128xf32> to vector<2x128xf32>
      %135 = vector.shape_cast %132 : vector<2x128xf32> to vector<1x2x128xf32>
      tpu.vector_store %arg7[%c0_73, %c0_74, %c0_75], %135 {strides = array<i32>} : memref<1x2x128xf32, #tpu.memory_space<vmem>>, vector<1x2x128xf32>,
    } else {
    }
    return
  }
  func.func @transform_0(%arg0: i32, %arg1: i32) -> (i32, i32, i32, i32) {
    %c0_i32 = arith.constant 0 : i32
    %c0_i32_0 = arith.constant 0 : i32
    %c0_i32_1 = arith.constant 0 : i32
    %c0_i32_2 = arith.constant 0 : i32
    return %arg0, %c0_i32, %c0_i32_0, %c0_i32_1 : i32, i32, i32, i32
  }
  func.func @transform_1(%arg0: i32, %arg1: i32) -> (i32, i32, i32, i32, i32) {
    %c0_i32 = arith.constant 0 : i32
    %c0_i32_0 = arith.constant 0 : i32
    %c0_i32_1 = arith.constant 0 : i32
    %c0_i32_2 = arith.constant 0 : i32
    return %arg1, %arg0, %c0_i32, %c0_i32_0, %c0_i32_1 : i32, i32, i32, i32, i32
  }
  func.func @transform_2(%arg0: i32, %arg1: i32) -> (i32, i32) {
    %c0_i32 = arith.constant 0 : i32
    %c0_i32_0 = arith.constant 0 : i32
    %c0_i32_1 = arith.constant 0 : i32
    return %c0_i32, %c0_i32_0 : i32, i32
  }
  func.func @transform_3(%arg0: i32, %arg1: i32) -> i32 {
    %c0_i32 = arith.constant 0 : i32
    %c0_i32_0 = arith.constant 0 : i32
    return %c0_i32 : i32
  }
  func.func @transform_4(%arg0: i32, %arg1: i32) -> (i32, i32, i32) {
    %c0_i32 = arith.constant 0 : i32
    %c0_i32_0 = arith.constant 0 : i32
    %c0_i32_1 = arith.constant 0 : i32
    return %arg0, %c0_i32, %c0_i32_0 : i32, i32, i32
  }
  func.func @transform_5(%arg0: i32, %arg1: i32) -> (i32, i32, i32) {
    %c0_i32 = arith.constant 0 : i32
    %c0_i32_0 = arith.constant 0 : i32
    %c0_i32_1 = arith.constant 0 : i32
    return %arg0, %c0_i32, %c0_i32_0 : i32, i32, i32
  }
}

</mosaic_0001>

<llo_original>
// kernel: tpu_custom_call.1
$region0: #{tpu_custom_call.1}
  #allocation0 [shape = 'u32[]', space=smem, size = 0x4, offset = 0x4, fixed_abs, tag = 'smem constant byte address 0x4 - core index']
  #allocation1 [shape = 'u32[144,128]{1,0:T(1,128)}', space=vmem, size = 0x12000, scoped, tag = 'internal scratch']
  #allocation2 [shape = 'f32[2,128]{1,0:T(2,128)}', space=vmem, size = 0x400, scoped, tag = 'scratch operand']
  #allocation3 [shape = 'f32[2,128]{1,0:T(2,128)}', space=vmem, size = 0x400, scoped, tag = 'scratch operand']
  #allocation4 [shape = 'f32[2,128]{1,0:T(2,128)}', space=vmem, size = 0x400, scoped, tag = 'scratch operand']
  %s0 = inlined_call_operand.hbm [shape: f32[2,4,2,128], index: 0, kind: input, shape index: {}]
  %s1 = inlined_call_operand.hbm [shape: bf16[5,2,4,2,128], index: 1, kind: input, shape index: {}]
  %s2 = inlined_call_operand.vmem [shape: f32[2,4], index: 2, kind: input, shape index: {}]
  %s3 = inlined_call_operand.vmem [shape: f32[2], index: 3, kind: input, shape index: {}]
  %s4 = inlined_call_operand.hbm [shape: f32[2,2,128], index: 4, kind: output, shape index: {0}]
  %s5 = inlined_call_operand.hbm [shape: f32[2,2,128], index: 5, kind: output, shape index: {1}]
  %6 = xla_tuple %s4, %s5
  %s7 = sld [smem:[#allocation0]]
  $region89: #{tpu_custom_call.1} parent=0
    _
  %s9 = ssub.s32 1, %s7
  %s10 = scalar_select 0, %s9, %s7
  $region1: #{tpu_custom_call.1} parent=0
    #allocation5 [shape = 'u8[8192]{0}', space=vmem, size = 0x2000, scoped, tag = 'input window, operand 0']
    #allocation6 [shape = 's32[2]{0}', space=sflag, size = 0x8, scoped, tag = 'scoped memory for tpu_custom_call.1']
    #allocation7 [shape = 's32[2]{0}', space=sflag, size = 0x8, scoped, tag = 'scoped memory for tpu_custom_call.1']
    #allocation8 [shape = 's32[2]{0}', space=sflag, size = 0x8, scoped, tag = 'scoped memory for tpu_custom_call.1']
    #allocation9 [shape = 'u8[4096]{0}', space=vmem, size = 0x1000, scoped, tag = 'input window, operand 1']
    #allocation10 [shape = 's32[2]{0}', space=sflag, size = 0x8, scoped, tag = 'scoped memory for tpu_custom_call.1']
    #allocation11 [shape = 'u8[1024]{0}', space=smem, size = 0x400, scoped, tag = 'input window, operand 2, single buffered']
    #allocation12 [shape = 'u8[512]{0}', space=smem, size = 0x200, scoped, tag = 'input window, operand 3, single buffered']
    #allocation13 [shape = 's32[1]{0}', space=sflag, size = 0x4, scoped, tag = 'scoped memory for tpu_custom_call.1']
    #allocation14 [shape = 'u8[2048]{0}', space=vmem, size = 0x800, scoped, tag = 'output window, operand 0']
    #allocation15 [shape = 'u8[2048]{0}', space=vmem, size = 0x800, scoped, tag = 'output window, operand 1']
    #allocation16 [shape = 's32[2]{0}', space=sflag, size = 0x8, scoped, tag = 'scoped memory for tpu_custom_call.1']
    %11 = vsyncpa [#allocation6], 0
    %s12 = scalar_lea.sflag [#allocation6], 1
    %13 = vsyncpa %s12, 0
    %14 = vsyncpa [#allocation10], 0
    %s15 = scalar_lea.sflag [#allocation10], 1
    %16 = vsyncpa %s15, 0
    %17 = vsyncpa [#allocation8], 0
    %18 = vsyncpa [#allocation13], 0
    %19 = vsyncpa [#allocation7], 0
    %s20 = scalar_lea.sflag [#allocation7], 1
    %21 = vsyncpa %s20, 0
    %22 = vsyncpa [#allocation16], 0
    %s23 = scalar_lea.sflag [#allocation16], 1
    %24 = vsyncpa %s23, 0
    loop: start=0, step=1, limit=12
    $region2: #{tpu_custom_call.1} parent=1 // loop_pre_header
      _
    $region3: #{tpu_custom_call.1} parent=1 // loop_header
      %s26 = sphi 0, %s30
      %p27 = scmp.ge.s32.totalorder %s26, 12
      %s33 = sphi 0, %s45
      %s34 = sphi 0, %s41
      %s35 = sphi 0, %s33
      %s36 = sphi 0, %s34
      %s37 = sphi 0, %s35
      %s38 = sphi 0, %s36
      %s48 = sphi 0, %s50
      %s51 = sphi 0, %s48
      %s52 = sphi 0, %s51
      %s68 = sphi 0, %s52
      %s76 = sphi 0, %s78
      %s79 = sphi 0, %s76
      %s80 = sphi 0, %s79
      %s96 = sphi 0, %s80
      %s100 = sphi 0, %s100
      %s102 = sphi 0, %s100
      %s103 = sphi 0, %s102
      %s117 = sphi 0, %s103
      %s121 = sphi 0, %s121
      %s123 = sphi 0, %s121
      %s124 = sphi 0, %s123
      %s138 = sphi 0, %s124
      %s144 = sphi 0, %s146
      %s147 = sphi 0, %s144
      %s148 = sphi 0, %s147
      %s164 = sphi 0, %s148
      %s170 = sphi 0, %s172
      %s173 = sphi 0, %s170
      %s174 = sphi 0, %s173
      %s190 = sphi 0, %s174
    $region4: #{tpu_custom_call.1} parent=1 // loop_header_branch
      %29 = sbr.rel (%p27) target = $region8
    $region5: #{tpu_custom_call.1} parent=1 // loop_body
      %s31 = ssub.s32 %s26, 1
      %s32 = ssub.s32 %s26, 2
      %s39 = sadd.s32 1, %s34
      %p40 = scmp.ge.s32.totalorder %s39, 5
      %s41 = scalar_select %p40, 0, %s39
      %s42 = sadd.s32 1, %s33
      %s43 = scalar_select %p40, %s42, %s33
      %p44 = scmp.ge.s32.totalorder %s43, 2
      %s45 = scalar_select %p44, 0, %s43
      %s46 = ssub.s32 %s33, %s45
      %p47 = scmp.eq.s32.totalorder %s46, 0
      %s49 = sadd.s32 %s48, 1
      %s50 = scalar_select %p47, %s48, %s49
      %p53 = pneg %p47
      %p54 = scmp.eq.s32.totalorder %s26, 9
      %p55 = por %p53, %p54
      %p56 = scmp.ne.s32.totalorder %s48, %s51
      %p57 = scmp.eq.s32.totalorder %s26, 0
      %p58 = por %p56, %p57
      %p59 = scmp.ne.s32.totalorder %s48, %s51
      %p60 = scmp.eq.s32.totalorder %s31, 9
      %p61 = por %p59, %p60
      %p62 = scmp.ne.s32.totalorder %s51, %s52
      %p63 = scmp.eq.s32.totalorder %s31, 0
      %p64 = por %p62, %p63
      %p65 = scmp.ne.s32.totalorder %s51, %s52
      %p66 = scmp.eq.s32.totalorder %s32, 9
      %p67 = por %p65, %p66
      %p69 = scmp.ne.s32.totalorder %s52, %s68
      %p70 = scmp.eq.s32.totalorder %s32, 0
      %p71 = por %p69, %p70
      %s72 = ssub.s32 %s34, %s41
      %s73 = ssub.s32 %s33, %s45
      %s74 = sor.u32 %s72, %s73
      %p75 = scmp.eq.s32.totalorder %s74, 0
      %s77 = sadd.s32 %s76, 1
      %s78 = scalar_select %p75, %s76, %s77
      %p81 = pneg %p75
      %p82 = scmp.eq.s32.totalorder %s26, 9
      %p83 = por %p81, %p82
      %p84 = scmp.ne.s32.totalorder %s76, %s79
      %p85 = scmp.eq.s32.totalorder %s26, 0
      %p86 = por %p84, %p85
      %p87 = scmp.ne.s32.totalorder %s76, %s79
      %p88 = scmp.eq.s32.totalorder %s31, 9
      %p89 = por %p87, %p88
      %p90 = scmp.ne.s32.totalorder %s79, %s80
      %p91 = scmp.eq.s32.totalorder %s31, 0
      %p92 = por %p90, %p91
      %p93 = scmp.ne.s32.totalorder %s79, %s80
      %p94 = scmp.eq.s32.totalorder %s32, 9
      %p95 = por %p93, %p94
      %p97 = scmp.ne.s32.totalorder %s80, %s96
      %p98 = scmp.eq.s32.totalorder %s32, 0
      %p99 = por %p97, %p98
      %s101 = sadd.s32 %s100, 1
      %p104 = scmp.eq.s32.totalorder %s26, 9
      %p105 = scmp.ne.s32.totalorder %s100, %s102
      %p106 = scmp.eq.s32.totalorder %s26, 0
      %p107 = por %p105, %p106
      %p108 = scmp.ne.s32.totalorder %s100, %s102
      %p109 = scmp.eq.s32.totalorder %s31, 9
      %p110 = por %p108, %p109
      %p111 = scmp.ne.s32.totalorder %s102, %s103
      %p112 = scmp.eq.s32.totalorder %s31, 0
      %p113 = por %p111, %p112
      %p114 = scmp.ne.s32.totalorder %s102, %s103
      %p115 = scmp.eq.s32.totalorder %s32, 9
      %p116 = por %p114, %p115
      %p118 = scmp.ne.s32.totalorder %s103, %s117
      %p119 = scmp.eq.s32.totalorder %s32, 0
      %p120 = por %p118, %p119
      %s122 = sadd.s32 %s121, 1
      %p125 = scmp.eq.s32.totalorder %s26, 9
      %p126 = scmp.ne.s32.totalorder %s121, %s123
      %p127 = scmp.eq.s32.totalorder %s26, 0
      %p128 = por %p126, %p127
      %p129 = scmp.ne.s32.totalorder %s121, %s123
      %p130 = scmp.eq.s32.totalorder %s31, 9
      %p131 = por %p129, %p130
      %p132 = scmp.ne.s32.totalorder %s123, %s124
      %p133 = scmp.eq.s32.totalorder %s31, 0
      %p134 = por %p132, %p133
      %p135 = scmp.ne.s32.totalorder %s123, %s124
      %p136 = scmp.eq.s32.totalorder %s32, 9
      %p137 = por %p135, %p136
      %p139 = scmp.ne.s32.totalorder %s124, %s138
      %p140 = scmp.eq.s32.totalorder %s32, 0
      %p141 = por %p139, %p140
      %s142 = ssub.s32 %s33, %s45
      %p143 = scmp.eq.s32.totalorder %s142, 0
      %s145 = sadd.s32 %s144, 1
      %s146 = scalar_select %p143, %s144, %s145
      %p149 = pneg %p143
      %p150 = scmp.eq.s32.totalorder %s26, 9
      %p151 = por %p149, %p150
      %p152 = scmp.ne.s32.totalorder %s144, %s147
      %p153 = scmp.eq.s32.totalorder %s26, 0
      %p154 = por %p152, %p153
      %p155 = scmp.ne.s32.totalorder %s144, %s147
      %p156 = scmp.eq.s32.totalorder %s31, 9
      %p157 = por %p155, %p156
      %p158 = scmp.ne.s32.totalorder %s147, %s148
      %p159 = scmp.eq.s32.totalorder %s31, 0
      %p160 = por %p158, %p159
      %p161 = scmp.ne.s32.totalorder %s147, %s148
      %p162 = scmp.eq.s32.totalorder %s32, 9
      %p163 = por %p161, %p162
      %p165 = scmp.ne.s32.totalorder %s148, %s164
      %p166 = scmp.eq.s32.totalorder %s32, 0
      %p167 = por %p165, %p166
      %s168 = ssub.s32 %s33, %s45
      %p169 = scmp.eq.s32.totalorder %s168, 0
      %s171 = sadd.s32 %s170, 1
      %s172 = scalar_select %p169, %s170, %s171
      %p175 = pneg %p169
      %p176 = scmp.eq.s32.totalorder %s26, 9
      %p177 = por %p175, %p176
      %p178 = scmp.ne.s32.totalorder %s170, %s173
      %p179 = scmp.eq.s32.totalorder %s26, 0
      %p180 = por %p178, %p179
      %p181 = scmp.ne.s32.totalorder %s170, %s173
      %p182 = scmp.eq.s32.totalorder %s31, 9
      %p183 = por %p181, %p182
      %p184 = scmp.ne.s32.totalorder %s173, %s174
      %p185 = scmp.eq.s32.totalorder %s31, 0
      %p186 = por %p184, %p185
      %p187 = scmp.ne.s32.totalorder %s173, %s174
      %p188 = scmp.eq.s32.totalorder %s32, 9
      %p189 = por %p187, %p188
      %p191 = scmp.ne.s32.totalorder %s174, %s190
      %p192 = scmp.eq.s32.totalorder %s32, 0
      %p193 = por %p191, %p192
      %p194 = scmp.le.s32.totalorder 1, %s26
      %p195 = scmp.lt.s32.totalorder %s26, 11
      %p196 = pnand %p194, %p195
      %p197 = pneg %p196
      // Predicated region
      $region9: #{tpu_custom_call.1} parent=5 // pred_check
        _
      $region10: #{tpu_custom_call.1} parent=5 // pred_check_branch
        %199 = sbr.rel (%p196) target = $region12
      $region11: #{tpu_custom_call.1} parent=5 // pred_region
        %s200 = ssub.s32 %s26, 1
        // Predicated region
        $region13: #{tpu_custom_call.1} parent=11 // pred_check
          %p201 = pneg %p113
        $region14: #{tpu_custom_call.1} parent=11 // pred_check_branch
          %203 = sbr.rel (%p201) target = $region16
        $region15: #{tpu_custom_call.1} parent=11 // pred_region
          %s205 = ssub.s32 32, 32
          %206 = vsyncadd [#allocation8], %s205
          %s208 = sshll.u32 %s2, 4
          %s209 = int_to_ptr.vmem [resolvable:$true] %s208
          %211 = dma.vmem_to_smem %s209, 32, [#allocation11], [#allocation8]
        $region16: #{tpu_custom_call.1} parent=11 // pred_fallthru
          _
        // Predicated region
        $region17: #{tpu_custom_call.1} parent=11 // pred_check
          %p212 = pneg %p134
        $region18: #{tpu_custom_call.1} parent=11 // pred_check_branch
          %214 = sbr.rel (%p212) target = $region20
        $region19: #{tpu_custom_call.1} parent=11 // pred_region
          %s216 = ssub.s32 16, 16
          %217 = vsyncadd [#allocation13], %s216
          %s219 = sshll.u32 %s3, 4
          %s220 = int_to_ptr.vmem [resolvable:$true] %s219
          %222 = dma.vmem_to_smem %s220, 16, [#allocation12], [#allocation13]
        $region20: #{tpu_custom_call.1} parent=11 // pred_fallthru
          _
      $region12: #{tpu_custom_call.1} parent=5 // pred_fallthru
        _
      %p223 = scmp.lt.s32.totalorder %s26, 10
      // Predicated region
      $region21: #{tpu_custom_call.1} parent=5 // pred_check
        %p224 = pneg %p223
      $region22: #{tpu_custom_call.1} parent=5 // pred_check_branch
        %226 = sbr.rel (%p224) target = $region24
      $region23: #{tpu_custom_call.1} parent=5 // pred_region
        // Predicated region
        $region25: #{tpu_custom_call.1} parent=23 // pred_check
          %p227 = pneg %p58
        $region26: #{tpu_custom_call.1} parent=23 // pred_check_branch
          %229 = sbr.rel (%p227) target = $region28
        $region27: #{tpu_custom_call.1} parent=23 // pred_region
          %s230 = sand.u32 %s48, 1
          %s231 = scalar_lea.sflag [#allocation6], %s230
          %s232 = sand.u32 %s48, 1
          %s233 = smul.addr %s232, 8
          %s234 = scalar_lea.vmem [#allocation5], %s233
          %s236 = ssub.s32 128, 128
          %237 = vsyncadd %s231, %s236
          %s238 = smul.addr %s33, 4
          %s239 = smul.addr %s238, 32
          %s240 = scalar_lea.hbm %s0, %s239
          %s241 = sshll.u32 %s234, 4
          %s242 = int_to_ptr.vmem [resolvable:$true] %s241
          %247 = dma.hbm_to_vmem [thread:$0]  %s240, 128, %s242, %s231, 32, 32, 2
        $region28: #{tpu_custom_call.1} parent=23 // pred_fallthru
          _
        // Predicated region
        $region29: #{tpu_custom_call.1} parent=23 // pred_check
          %p248 = pneg %p86
        $region30: #{tpu_custom_call.1} parent=23 // pred_check_branch
          %250 = sbr.rel (%p248) target = $region32
        $region31: #{tpu_custom_call.1} parent=23 // pred_region
          %s251 = sand.u32 %s76, 1
          %s252 = scalar_lea.sflag [#allocation10], %s251
          %s253 = sand.u32 %s76, 1
          %s254 = smul.addr %s253, 4
          %s255 = scalar_lea.vmem [#allocation9], %s254
          %s257 = ssub.s32 64, 64
          %258 = vsyncadd %s252, %s257
          %s259 = smul.addr %s33, 4
          %s260 = smul.addr %s34, 8
          %s261 = sadd.s32 %s259, %s260
          %s262 = smul.addr %s261, 16
          %s263 = scalar_lea.hbm %s1, %s262
          %s264 = sshll.u32 %s255, 4
          %s265 = int_to_ptr.vmem [resolvable:$true] %s264
          %270 = dma.hbm_to_vmem [thread:$0]  %s263, 64, %s265, %s252, 16, 16, 1
        $region32: #{tpu_custom_call.1} parent=23 // pred_fallthru
          _
      $region24: #{tpu_custom_call.1} parent=5 // pred_fallthru
        _
      %p271 = scmp.le.s32.totalorder 1, %s26
      %p272 = scmp.lt.s32.totalorder %s26, 11
      %p273 = pnand %p271, %p272
      %p274 = pneg %p273
      // Predicated region
      $region33: #{tpu_custom_call.1} parent=5 // pred_check
        _
      $region34: #{tpu_custom_call.1} parent=5 // pred_check_branch
        %276 = sbr.rel (%p273) target = $region36
      $region35: #{tpu_custom_call.1} parent=5 // pred_region
        %s277 = ssub.s32 %s26, 1
        %s278 = sand.u32 %s51, 1
        %s279 = scalar_lea.sflag [#allocation6], %s278
        %s280 = sand.u32 %s51, 1
        %s281 = smul.addr %s280, 8
        %s282 = scalar_lea.vmem [#allocation5], %s281
        // Predicated region
        $region37: #{tpu_custom_call.1} parent=35 // pred_check
          %p283 = pneg %p64
        $region38: #{tpu_custom_call.1} parent=35 // pred_check_branch
          %285 = sbr.rel (%p283) target = $region40
        $region39: #{tpu_custom_call.1} parent=35 // pred_region
          %286 = dma.done %s279, 128
        $region40: #{tpu_custom_call.1} parent=35 // pred_fallthru
          _
        %s287 = sand.u32 %s79, 1
        %s288 = scalar_lea.sflag [#allocation10], %s287
        %s289 = sand.u32 %s79, 1
        %s290 = smul.addr %s289, 4
        %s291 = scalar_lea.vmem [#allocation9], %s290
        // Predicated region
        $region41: #{tpu_custom_call.1} parent=35 // pred_check
          %p292 = pneg %p92
        $region42: #{tpu_custom_call.1} parent=35 // pred_check_branch
          %294 = sbr.rel (%p292) target = $region44
        $region43: #{tpu_custom_call.1} parent=35 // pred_region
          %295 = dma.done %s288, 64
        $region44: #{tpu_custom_call.1} parent=35 // pred_fallthru
          _
        // Predicated region
        $region45: #{tpu_custom_call.1} parent=35 // pred_check
          %p296 = pneg %p113
        $region46: #{tpu_custom_call.1} parent=35 // pred_check_branch
          %298 = sbr.rel (%p296) target = $region48
        $region47: #{tpu_custom_call.1} parent=35 // pred_region
          %299 = dma.done [#allocation8], 32
        $region48: #{tpu_custom_call.1} parent=35 // pred_fallthru
          _
        // Predicated region
        $region49: #{tpu_custom_call.1} parent=35 // pred_check
          %p300 = pneg %p134
        $region50: #{tpu_custom_call.1} parent=35 // pred_check_branch
          %302 = sbr.rel (%p300) target = $region52
        $region51: #{tpu_custom_call.1} parent=35 // pred_region
          %303 = dma.done [#allocation13], 16
        $region52: #{tpu_custom_call.1} parent=35 // pred_fallthru
          _
        %304 = sfence
        %s305 = sand.u32 %s51, 1
        %s306 = scalar_lea.sflag [#allocation6], %s305
        %s307 = sand.u32 %s51, 1
        %s308 = smul.addr %s307, 8
        %s309 = scalar_lea.vmem [#allocation5], %s308
        %p310 = pneg %p64
        %p311 = pneg %p61
        %s312 = sand.u32 %s79, 1
        %s313 = scalar_lea.sflag [#allocation10], %s312
        %s314 = sand.u32 %s79, 1
        %s315 = smul.addr %s314, 4
        %s316 = scalar_lea.vmem [#allocation9], %s315
        %p317 = pneg %p92
        %p318 = pneg %p89
        %p319 = pneg %p113
        %p320 = pneg %p110
        %p321 = pneg %p134
        %p322 = pneg %p131
        %p323 = pneg %p160
        %p324 = pneg %p157
        %s325 = sand.u32 %s147, 1
        %s326 = scalar_lea.sflag [#allocation7], %s325
        %s327 = sand.u32 %s147, 1
        %s328 = smul.addr %s327, 2
        %s329 = scalar_lea.vmem [#allocation14], %s328
        %p330 = pneg %p186
        %p331 = pneg %p183
        %s332 = sand.u32 %s173, 1
        %s333 = scalar_lea.sflag [#allocation16], %s332
        %s334 = sand.u32 %s173, 1
        %s335 = smul.addr %s334, 2
        %s336 = scalar_lea.vmem [#allocation15], %s335
        %s337 = sld [smem:[#allocation11 + $0x80]]
        %s338 = sld [smem:[#allocation11]]
        %s339 = ssub.f32 %s337, %s338
        %s340 = sld [smem:[#allocation11 + $0x81]]
        %s341 = sld [smem:[#allocation11 + $0x1]]
        %s342 = ssub.f32 %s340, %s341
        %s343 = sld [smem:[#allocation11 + $0x82]]
        %s344 = sld [smem:[#allocation11 + $0x2]]
        %s345 = ssub.f32 %s343, %s344
        %s346 = sld [smem:[#allocation11 + $0x83]]
        %s347 = sld [smem:[#allocation11 + $0x3]]
        %s348 = ssub.f32 %s346, %s347
        %s349 = sld [smem:[#allocation12 + $0x1]]
        %s350 = sld [smem:[#allocation12]]
        %s351 = ssub.f32 %s349, %s350
        %s352 = smul.f32 %s339, %s339
        %s353 = smul.f32 %s342, %s342
        %s354 = sadd.f32 %s352, %s353
        %s355 = smul.f32 %s345, %s345
        %s356 = sadd.f32 %s354, %s355
        %s357 = smul.f32 %s348, %s348
        %s358 = sadd.f32 %s356, %s357
        %v359 = vstv %s358
        %v360 = vrsqrt.pop %v359
        %v361 = vmul.f32 %v359, %v360
        %vm362 = vcmp.eq.f32.partialorder %v359, inf
        %v363 = vsel %vm362, %v359, %v361
        %vm364 = vcmp.eq.f32.partialorder %v359, 0.0
        %v365 = vand.u32 %v359, 2147483648
        %v366 = vsel %vm364, %v365, %v363
        %s367 = vtos %v366
        %p368 = scmp.eq.s32.totalorder %s36, 0
        // Predicated region
        $region53: #{tpu_custom_call.1} parent=35 // pred_check
          %p369 = pneg %p368
        $region54: #{tpu_custom_call.1} parent=35 // pred_check_branch
          %371 = sbr.rel (%p369) target = $region56
        $region55: #{tpu_custom_call.1} parent=35 // pred_region
          %v372 = vld [vmem:[%s282] sm:$0x3]
          %v373 = vstv %s339
          %v374 = vmul.f32 %v372, %v373
          %s375 = scalar_lea.vmem %s282, 2 [#allocation5]
          %v376 = vld [vmem:[%s375] sm:$0x3]
          %v377 = vstv %s342
          %v378 = vmul.f32 %v376, %v377
          %v379 = vadd.f32 %v374, %v378
          %s380 = scalar_lea.vmem %s282, 4 [#allocation5]
          %v381 = vld [vmem:[%s380] sm:$0x3]
          %v382 = vstv %s345
          %v383 = vmul.f32 %v381, %v382
          %v384 = vadd.f32 %v379, %v383
          %s385 = scalar_lea.vmem %s282, 6 [#allocation5]
          %v386 = vld [vmem:[%s385] sm:$0x3]
          %v387 = vstv %s348
          %v388 = vmul.f32 %v386, %v387
          %v389 = vadd.f32 %v384, %v388
          %v390 = vstv %s351
          %v391 = vadd.f32 %v389, %v390
          %392 = vst [vmem:[#allocation3] sm:$0x3] %v391
          %v393 = vmul.f32 %v391, 0.5
          %v394 = vtanh.pop %v393
          %v395 = vmul.f32 %v394, 0.5
          %v396 = vadd.f32 %v395, 0.5
          %397 = vst [vmem:[#allocation4] sm:$0x3] %v396
        $region56: #{tpu_custom_call.1} parent=35 // pred_fallthru
          _
        %v398 = vld [vmem:[#allocation3] sm:$0x3]
        %v399 = vld [vmem:[#allocation4] sm:$0x3]
        %v400 = vld [vmem:[%s291] sm:$0x1]
        %v401 = vunpack.c.l.bf16 %v400
        %v402 = vmul.f32 %v401, %v401
        %v403 = vstv %s339
        %v404 = vmul.f32 %v401, %v403
        %s405 = scalar_lea.vmem %s291, 1 [#allocation9]
        %v406 = vld [vmem:[%s405] sm:$0x1]
        %v407 = vunpack.c.l.bf16 %v406
        %v408 = vmul.f32 %v407, %v407
        %v409 = vadd.f32 %v402, %v408
        %v410 = vstv %s342
        %v411 = vmul.f32 %v407, %v410
        %v412 = vadd.f32 %v404, %v411
        %s413 = scalar_lea.vmem %s291, 2 [#allocation9]
        %v414 = vld [vmem:[%s413] sm:$0x1]
        %v415 = vunpack.c.l.bf16 %v414
        %v416 = vmul.f32 %v415, %v415
        %v417 = vadd.f32 %v409, %v416
        %v418 = vstv %s345
        %v419 = vmul.f32 %v415, %v418
        %v420 = vadd.f32 %v412, %v419
        %s421 = scalar_lea.vmem %s291, 3 [#allocation9]
        %v422 = vld [vmem:[%s421] sm:$0x1]
        %v423 = vunpack.c.l.bf16 %v422
        %v424 = vmul.f32 %v423, %v423
        %v425 = vadd.f32 %v417, %v424
        %v426 = vstv %s348
        %v427 = vmul.f32 %v423, %v426
        %v428 = vadd.f32 %v420, %v427
        %vm429 = vcmask 1041408
        %v430 = vsel %vm429, %v425, 0.0
        %431 = vadd.xlane.f32.xlu0 %v430
        %v432 = vpop.xlane.xlu0 %431
        %v433 = vsel %vm429, %v432, 0.0
        %v434 = vrot.slane %v433, 4
        %v435 = vadd.f32 %v433, %v434
        %v436 = vrot.slane %v435, 2
        %v437 = vadd.f32 %v435, %v436
        %v438 = vrot.slane %v437, 1
        %v439 = vadd.f32 %v437, %v438
        %v440 = vrsqrt.pop %v439
        %v441 = vmul.f32 %v439, %v440
        %vm442 = vcmp.eq.f32.partialorder %v439, inf
        %v443 = vsel %vm442, %v439, %v441
        %vm444 = vcmp.eq.f32.partialorder %v439, 0.0
        %v445 = vand.u32 %v439, 2147483648
        %v446 = vsel %vm444, %v445, %v443
        %v447 = vadd.f32 %v446, 1e-08
        %v448 = vrcp.pop %v447
        %v449 = vmul.f32 1.0, %v448
        %v450 = vmul.f32 %v428, %v449
        %v451 = vmul.f32 %v450, 10.0
        %v452 = vadd.f32 %v398, %v451
        %v453 = vmul.f32 %v452, 0.5
        %v454 = vtanh.pop %v453
        %v455 = vmul.f32 %v454, 0.5
        %v456 = vadd.f32 %v455, 0.5
        %v457 = vsub.f32 %v456, %v399
        %v458 = vmul.f32 %v457, 5.0
        %v459 = vmul.f32 %v458, %v458
        %v460 = vsel %vm429, %v459, 0.0
        %461 = vadd.xlane.f32.xlu0 %v460
        %v462 = vpop.xlane.xlu0 %461
        %v463 = vsel %vm429, %v462, 0.0
        %v464 = vrot.slane %v463, 4
        %v465 = vadd.f32 %v463, %v464
        %v466 = vrot.slane %v465, 2
        %v467 = vadd.f32 %v465, %v466
        %v468 = vrot.slane %v467, 1
        %v469 = vadd.f32 %v467, %v468
        %v470 = vrsqrt.pop %v469
        %v471 = vmul.f32 %v469, %v470
        %vm472 = vcmp.eq.f32.partialorder %v469, inf
        %v473 = vsel %vm472, %v469, %v471
        %vm474 = vcmp.eq.f32.partialorder %v469, 0.0
        %v475 = vand.u32 %v469, 2147483648
        %v476 = vsel %vm474, %v475, %v473
        %v477 = vstv %s367
        %v478 = vmul.f32 %v476, %v477
        %v479 = vadd.f32 %v478, 1e-08
        %v480 = vstv %s358
        %v481 = vrcp.pop %v479
        %v482 = vmul.f32 %v480, %v481
        %v483 = vmul.f32 %v458, %v482
        %v484 = vadd.f32 %v398, %v483
        %v485 = vmul.f32 %v484, 0.5
        %v486 = vtanh.pop %v485
        %v487 = vmul.f32 %v486, 0.5
        %v488 = vadd.f32 %v487, 0.5
        // Predicated region
        $region57: #{tpu_custom_call.1} parent=35 // pred_check
          %p489 = pneg %p368
        $region58: #{tpu_custom_call.1} parent=35 // pred_check_branch
          %491 = sbr.rel (%p489) target = $region60
        $region59: #{tpu_custom_call.1} parent=35 // pred_region
          %492 = vst [vmem:[#allocation2] sm:$0x3] %v488
          %493 = vst [vmem:[%s329] sm:$0x3] 0.0
          %494 = vst [vmem:[%s336] sm:$0x3] 0.0
        $region60: #{tpu_custom_call.1} parent=35 // pred_fallthru
          _
        %p495 = scmp.gt.s32.totalorder %s36, 0
        // Predicated region
        $region61: #{tpu_custom_call.1} parent=35 // pred_check
          %p496 = pneg %p495
        $region62: #{tpu_custom_call.1} parent=35 // pred_check_branch
          %498 = sbr.rel (%p496) target = $region64
        $region63: #{tpu_custom_call.1} parent=35 // pred_region
          %v499 = vld [vmem:[#allocation2] sm:$0x3]
          %v500 = vsub.f32 %v488, %v499
          %v501 = vld [vmem:[%s329] sm:$0x3]
          %v502 = vadd.f32 %v501, %v500
          %503 = vst [vmem:[%s329] sm:$0x3] %v502
          %v504 = vld [vmem:[%s336] sm:$0x3]
          %v505 = vmul.f32 %v500, %v500
          %v506 = vadd.f32 %v504, %v505
          %507 = vst [vmem:[%s336] sm:$0x3] %v506
        $region64: #{tpu_custom_call.1} parent=35 // pred_fallthru
          _
        %p508 = scmp.eq.s32.totalorder %s36, 4
        // Predicated region
        $region65: #{tpu_custom_call.1} parent=35 // pred_check
          %p509 = pneg %p508
        $region66: #{tpu_custom_call.1} parent=35 // pred_check_branch
          %511 = sbr.rel (%p509) target = $region68
        $region67: #{tpu_custom_call.1} parent=35 // pred_region
          %v512 = vld [vmem:[%s329] sm:$0x3]
          %v513 = vmul.f32 %v512, 0.2
          %v514 = vld [vmem:[%s336] sm:$0x3]
          %v515 = vmul.f32 %v514, 0.2
          %v516 = vmul.f32 %v513, %v513
          %v517 = vsub.f32 %v515, %v516
          %v518 = vmax.f32 %v517, 0.0
          %v519 = vld [vmem:[#allocation2] sm:$0x3]
          %v520 = vadd.f32 %v519, %v513
          %521 = vst [vmem:[%s329] sm:$0x3] %v520
          %v522 = vrsqrt.pop %v518
          %v523 = vmul.f32 %v518, %v522
          %vm524 = vcmp.eq.f32.partialorder %v518, inf
          %v525 = vsel %vm524, %v518, %v523
          %vm526 = vcmp.eq.f32.partialorder %v518, 0.0
          %v527 = vand.u32 %v518, 2147483648
          %v528 = vsel %vm526, %v527, %v525
          %529 = vst [vmem:[%s336] sm:$0x3] %v528
        $region68: #{tpu_custom_call.1} parent=35 // pred_fallthru
          _
        %s530 = sand.u32 %s147, 1
        %s531 = scalar_lea.sflag [#allocation7], %s530
        %s532 = sand.u32 %s147, 1
        %s533 = smul.addr %s532, 2
        %s534 = scalar_lea.vmem [#allocation14], %s533
        %s535 = sand.u32 %s173, 1
        %s536 = scalar_lea.sflag [#allocation16], %s535
        %s537 = sand.u32 %s173, 1
        %s538 = smul.addr %s537, 2
        %s539 = scalar_lea.vmem [#allocation15], %s538
        // Predicated region
        $region69: #{tpu_custom_call.1} parent=35 // pred_check
          %p540 = pneg %p157
        $region70: #{tpu_custom_call.1} parent=35 // pred_check_branch
          %542 = sbr.rel (%p540) target = $region72
        $region71: #{tpu_custom_call.1} parent=35 // pred_region
          %s544 = ssub.s32 32, 32
          %545 = vsyncadd %s531, %s544
          %s546 = smul.addr %s35, 32
          %s547 = scalar_lea.hbm %s4, %s546
          %s549 = sshll.u32 %s534, 4
          %s550 = int_to_ptr.vmem [resolvable:$true] %s549
          %552 = dma.vmem_to_hbm [thread:$0]  %s550, 32, %s547, %s531
        $region72: #{tpu_custom_call.1} parent=35 // pred_fallthru
          _
        // Predicated region
        $region73: #{tpu_custom_call.1} parent=35 // pred_check
          %p553 = pneg %p183
        $region74: #{tpu_custom_call.1} parent=35 // pred_check_branch
          %555 = sbr.rel (%p553) target = $region76
        $region75: #{tpu_custom_call.1} parent=35 // pred_region
          %s557 = ssub.s32 32, 32
          %558 = vsyncadd %s536, %s557
          %s559 = smul.addr %s35, 32
          %s560 = scalar_lea.hbm %s5, %s559
          %s562 = sshll.u32 %s539, 4
          %s563 = int_to_ptr.vmem [resolvable:$true] %s562
          %565 = dma.vmem_to_hbm [thread:$0]  %s563, 32, %s560, %s536
        $region76: #{tpu_custom_call.1} parent=35 // pred_fallthru
          _
      $region36: #{tpu_custom_call.1} parent=5 // pred_fallthru
        _
      %p566 = scmp.le.s32.totalorder 2, %s26
      // Predicated region
      $region77: #{tpu_custom_call.1} parent=5 // pred_check
        %p567 = pneg %p566
      $region78: #{tpu_custom_call.1} parent=5 // pred_check_branch
        %569 = sbr.rel (%p567) target = $region80
      $region79: #{tpu_custom_call.1} parent=5 // pred_region
        %s570 = ssub.s32 %s26, 2
        // Predicated region
        $region81: #{tpu_custom_call.1} parent=79 // pred_check
          %p571 = pneg %p163
        $region82: #{tpu_custom_call.1} parent=79 // pred_check_branch
          %573 = sbr.rel (%p571) target = $region84
        $region83: #{tpu_custom_call.1} parent=79 // pred_region
          %s574 = sand.u32 %s148, 1
          %s575 = scalar_lea.sflag [#allocation7], %s574
          %s576 = sand.u32 %s148, 1
          %s577 = smul.addr %s576, 2
          %s578 = scalar_lea.vmem [#allocation14], %s577
          %579 = dma.done %s575, 32
        $region84: #{tpu_custom_call.1} parent=79 // pred_fallthru
          _
        // Predicated region
        $region85: #{tpu_custom_call.1} parent=79 // pred_check
          %p580 = pneg %p189
        $region86: #{tpu_custom_call.1} parent=79 // pred_check_branch
          %582 = sbr.rel (%p580) target = $region88
        $region87: #{tpu_custom_call.1} parent=79 // pred_region
          %s583 = sand.u32 %s174, 1
          %s584 = scalar_lea.sflag [#allocation16], %s583
          %s585 = sand.u32 %s174, 1
          %s586 = smul.addr %s585, 2
          %s587 = scalar_lea.vmem [#allocation15], %s586
          %588 = dma.done %s584, 32
        $region88: #{tpu_custom_call.1} parent=79 // pred_fallthru
          _
      $region80: #{tpu_custom_call.1} parent=5 // pred_fallthru
        _
    $region6: #{tpu_custom_call.1} parent=1 // loop_footer
      %s30 = sadd.s32 1, %s26
    $region7: #{tpu_custom_call.1} parent=1 // loop_footer_branch
      %25 = sbr.rel target = $region3
    $region8: #{tpu_custom_call.1} parent=1 // loop_exit
      _
    %589 = vsyncpa [#allocation6], 1
    %s590 = scalar_lea.sflag [#allocation6], 1
    %591 = vsyncpa %s590, 1
    %592 = vsyncpa [#allocation10], 1
    %s593 = scalar_lea.sflag [#allocation10], 1
    %594 = vsyncpa %s593, 1
    %595 = vsyncpa [#allocation7], 1
    %s596 = scalar_lea.sflag [#allocation7], 1
    %597 = vsyncpa %s596, 1
    %598 = vsyncpa [#allocation16], 1
    %s599 = scalar_lea.sflag [#allocation16], 1
    %600 = vsyncpa %s599, 1
    %601 = vsyncpa [#allocation8], 1
    %s602 = scalar_lea.sflag [#allocation8], 1
    %603 = vsyncpa %s602, 1
    %604 = vsyncpa [#allocation13], 1

</llo_original>
